<compile_context>
chip_gen: v5e
topology: v5e:2x2
jax: 0.10.0
libtpu: 0.0.40
codegen_flags: <defaults>
</compile_context>

<pallas_src>
import jax
import jax.numpy as jnp
from jax.experimental import pallas as pl
from jax.experimental.pallas import tpu as pltpu


# ---------------------------------------------------------------------------
# Kernels
# ---------------------------------------------------------------------------
def _center_loss_resident_kernel(labels_ref, x_ref, centers_ref, out_ref, cbuf):
    """Primary path: centers table resident in VMEM.

    labels_ref : (B,)    int32, SMEM (scalar prefetch)
    x_ref      : (TB, D) VMEM tile of the features
    centers_ref: (C, D)  VMEM-resident centers (constant block, DMA'd once)
    out_ref    : (TB, 1) per-row clipped squared distance to the label center
    cbuf       : (TB, D) f32 VMEM scratch for the gathered center rows
    """
    t = pl.program_id(0)
    tb = x_ref.shape[0]

    # Gather c_{labels[i]} for the TB rows of this tile straight out of the
    # VMEM-resident table (no DMA descriptors / semaphores).  Cast to f32 on
    # store so sub-32-bit center dtypes never hit packed-sublane row stores.
    @pl.loop(0, tb)
    def _(r):
        idx = labels_ref[t * tb + r]
        cbuf[pl.ds(r, 1), :] = centers_ref[pl.ds(idx, 1), :].astype(jnp.float32)

    x = x_ref[...].astype(jnp.float32)
    diff = x - cbuf[...]
    d = jnp.sum(diff * diff, axis=1, keepdims=True)        # (TB, 1), always >= 0
    out_ref[...] = jnp.clip(d, 1e-12, 1e12)


def _center_loss_hbm_gather_kernel(labels_ref, x_ref, centers_hbm, out_ref,
                                   cbuf, sem):
    """Fallback path (class table too large for VMEM): double-buffered HBM
    row gather.

    centers_hbm: (C, D)      raw HBM ref (memory_space=pl.ANY)
    cbuf       : (2, TB, D)  VMEM scratch, two buffer slots
    sem        : (2,)        DMA semaphores, one shared per slot
    """
    # TODO(synk): dedupe repeated labels within a tile (PxK sampling batches)
    #             to cut the gather traffic ~Kx.
    # TODO(synk): for sub-32-bit center dtypes, pack rows to uint32
    #             (pltpu.bitcast) before the per-row DMA to avoid
    #             sublane-strided packed-row writes.
    t = pl.program_id(0)
    nt = pl.num_programs(0)
    tb = x_ref.shape[0]

    def issue_tile(step, slot):
        # TB per-row gather DMAs into `slot`, all in flight concurrently, all
        # signalling the slot's shared semaphore.
        @pl.loop(0, tb)
        def _(r):
            idx = labels_ref[step * tb + r]
            pltpu.make_async_copy(
                centers_hbm.at[pl.ds(idx, 1)],
                cbuf.at[slot, pl.ds(r, 1)],
                sem.at[slot],
            ).start()

    def wait_tile(slot):
        # TB one-row waits exactly balance the TB one-row starts above.
        @pl.loop(0, tb)
        def _(r):
            pltpu.make_async_copy(
                centers_hbm.at[pl.ds(0, 1)],
                cbuf.at[slot, pl.ds(r, 1)],
                sem.at[slot],
            ).wait()

    cur = t % 2

    @pl.when(t == 0)
    def _():
        issue_tile(0, 0)                    # prime the pipeline

    wait_tile(cur)                          # gathers for tile t (issued at t-1)

    @pl.when(t + 1 < nt)
    def _():
        issue_tile(t + 1, 1 - cur)          # overlap gather(t+1) with compute(t)

    x = x_ref[...].astype(jnp.float32)
    c = cbuf[cur].astype(jnp.float32)
    diff = x - c
    d = jnp.sum(diff * diff, axis=1, keepdims=True)
    out_ref[...] = jnp.clip(d, 1e-12, 1e12)


# ---------------------------------------------------------------------------
# Wrapper
# ---------------------------------------------------------------------------
def _pick_tile_b(batch, tile_b, sublane_mult):
    """Largest tile <= tile_b that is a multiple of `sublane_mult`, divides the
    batch, and (when possible) keeps the grid >= 2 steps for v7x megacore."""
    cap = tile_b
    if batch >= 2 * sublane_mult:
        cap = min(cap, batch // 2)          # keep >= 2 grid steps
    tb = min(cap, batch)
    tb -= tb % sublane_mult
    while tb >= sublane_mult and batch % tb != 0:
        tb -= sublane_mult
    if tb < sublane_mult or batch % tb != 0:
        tb = batch                          # full-dim block is always legal
    return tb


def center_loss(x, centers, labels, *, tile_b=128,
                max_resident_bytes=28 * 1024 * 1024):
    """CenterLoss forward: sum(clip(distmat * onehot_mask, 1e-12, 1e12)) / B."""
    B, D = x.shape
    C, Dc = centers.shape
    assert D == Dc, "feature dims of x and centers must match"
    assert labels.shape == (B,), "labels must have shape (batch,)"
    labels_i32 = labels.astype(jnp.int32)

    xsz = x.dtype.itemsize
    csz = centers.dtype.itemsize
    # f32 -> 8-row sublane tile, bf16 -> 16, int8/fp8 -> 32.
    sublane_mult = 8 * max(1, 4 // xsz)
    tb = _pick_tile_b(B, tile_b, sublane_mult)
    num_tiles = B // tb

    # VMEM working set of the resident path (pipeline double-buffers the x tile
    # and, conservatively, the constant centers block).  The 28 MiB gate is
    # sized for v7x (64 MiB physical / 32 MiB default scoped per TensorCore).
    resident_need = (2 * C * D * csz          # resident centers block
                     + 2 * tb * D * xsz       # double-buffered x tiles
                     + tb * D * 4             # f32 gather scratch
                     + (1 << 20))             # out blocks + internal scratch
    use_resident = resident_need <= max_resident_bytes

    if use_resident:
        vmem_limit = int(min(max(resident_need + (4 << 20), 16 << 20), 48 << 20))
        cost = pl.CostEstimate(
            flops=3 * B * D, transcendentals=0,
            bytes_accessed=B * D * xsz + C * D * csz + B * 4 + B * 4)
        per_row = pl.pallas_call(
            _center_loss_resident_kernel,
            out_shape=jax.ShapeDtypeStruct((B, 1), jnp.float32),
            grid_spec=pltpu.PrefetchScalarGridSpec(
                num_scalar_prefetch=1,
                grid=(num_tiles,),
                in_specs=[
                    # x tile, streamed per grid step.
                    pl.BlockSpec((tb, D), lambda t, labels: (t, 0)),
                    # centers: full-extent block, constant index -> DMA'd once.
                    pl.BlockSpec((C, D), lambda t, labels: (0, 0)),
                ],
                out_specs=pl.BlockSpec((tb, 1), lambda t, labels: (t, 0)),
                scratch_shapes=[pltpu.VMEM((tb, D), jnp.float32)],
            ),
            compiler_params=pltpu.CompilerParams(
                dimension_semantics=("parallel",),     # steps are independent
                vmem_limit_bytes=vmem_limit),
            cost_estimate=cost,
        )(labels_i32, x, centers)
    else:
        fallback_need = 2 * tb * D * xsz + 2 * tb * D * csz + (1 << 20)
        vmem_limit = int(min(max(fallback_need + (4 << 20), 16 << 20), 48 << 20))
        cost = pl.CostEstimate(
            flops=3 * B * D, transcendentals=0,
            bytes_accessed=B * D * xsz + B * D * csz + B * 4 + B * 4)
        per_row = pl.pallas_call(
            _center_loss_hbm_gather_kernel,
            out_shape=jax.ShapeDtypeStruct((B, 1), jnp.float32),
            grid_spec=pltpu.PrefetchScalarGridSpec(
                num_scalar_prefetch=1,
                grid=(num_tiles,),
                in_specs=[
                    pl.BlockSpec((tb, D), lambda t, labels: (t, 0)),
                    pl.BlockSpec(memory_space=pl.ANY),   # centers stay in HBM
                ],
                out_specs=pl.BlockSpec((tb, 1), lambda t, labels: (t, 0)),
                scratch_shapes=[
                    pltpu.VMEM((2, tb, D), centers.dtype),
                    pltpu.SemaphoreType.DMA((2,)),
                ],
            ),
            compiler_params=pltpu.CompilerParams(
                # cross-step double buffering is a serial dependency between
                # consecutive grid steps -> must not be split across cores.
                dimension_semantics=("arbitrary",),
                vmem_limit_bytes=vmem_limit),
            cost_estimate=cost,
        )(labels_i32, x, centers)

    # Finalize: matched-entry sum + analytic floor from the B*(C-1) masked-out
    # entries (each contributes exactly clip(0, 1e-12, 1e12) = 1e-12), then /B.
    floor = jnp.float32(1e-12) * jnp.float32(B * (C - 1))
    return (jnp.sum(per_row) + floor) / B


# ---------------------------------------------------------------------------
# Pure-JAX reference (mirrors the PyTorch forward)
# ---------------------------------------------------------------------------
def center_loss_ref(x, centers, labels):
    B = x.shape[0]
    C = centers.shape[0]
    distmat = (jnp.sum(x * x, axis=1, keepdims=True)
               + jnp.sum(centers * centers, axis=1)[None, :]
               - 2.0 * jnp.dot(x, centers.T,
                               precision=jax.lax.Precision.HIGHEST))
    classes = jnp.arange(C, dtype=jnp.int32)
    mask = (labels[:, None].astype(jnp.int32) == classes[None, :])
    dist = distmat * mask.astype(jnp.float32)
    return jnp.sum(jnp.clip(dist, 1e-12, 1e12)) / B


if __name__ == "__main__":
    # Small, deterministic shapes consistent with the module's forward
    # (defaults are num_classes=751, feat_dim=2048; scaled down here).
    batch, feat_dim, num_classes = 256, 128, 37

    key = jax.random.PRNGKey(0)
    kx, kc, kl = jax.random.split(key, 3)
    x = jax.random.normal(kx, (batch, feat_dim), dtype=jnp.float32)
    # nn.Parameter(torch.randn(num_classes, feat_dim)) — standard normal init.
    centers = jax.random.normal(kc, (num_classes, feat_dim), dtype=jnp.float32)
    labels = jax.random.randint(kl, (batch,), 0, num_classes, dtype=jnp.int32)

    ref = center_loss_ref(x, centers, labels)

    # Primary path: VMEM-resident centers (2 grid steps of 128 rows each).
    loss = jax.block_until_ready(center_loss(x, centers, labels))
    assert jnp.allclose(loss, ref, rtol=1e-4, atol=1e-5), (loss, ref)

    # Fallback path (forced): double-buffered HBM row-gather, used when the
    # class table would not fit in VMEM.
    loss_fb = jax.block_until_ready(
        center_loss(x, centers, labels, max_resident_bytes=0))
    assert jnp.allclose(loss_fb, ref, rtol=1e-4, atol=1e-5), (loss_fb, ref)

    print("KERNEL_OK")
</pallas_src>

<mosaic_0001>
module attributes {stable_mosaic.version = 11 : i64} {
  func.func @_center_loss_resident_kernel(%arg0: i32, %arg1: memref<256xi32, #tpu.memory_space<smem>>, %arg2: memref<128x128xf32, #tpu.memory_space<vmem>>, %arg3: memref<37x128xf32, #tpu.memory_space<vmem>>, %arg4: memref<128x1xf32, #tpu.memory_space<vmem>>, %arg5: memref<128x128xf32, #tpu.memory_space<vmem>>) attributes {dimension_semantics = [#tpu.dimension_semantics<parallel>], iteration_bounds = array<i64: 2>, scalar_prefetch = 1 : i64, scratch_operands = 1 : i64, tpu.core_type = #tpu.core_type<tc>, window_params = [{transform_indices = @transform_0, window_bounds = array<i64: 128, 128>}, {pipeline_mode = #tpu.pipeline_mode<synchronous>, transform_indices = @transform_1, window_bounds = array<i64: 37, 128>}, {transform_indices = @transform_2, window_bounds = array<i64: 128, 1>}]} {
    %c0_i32 = arith.constant 0 : i32
    %c128_i32 = arith.constant 128 : i32
    %0 = arith.addi %c0_i32, %c128_i32 : i32
    %c1_i32 = arith.constant 1 : i32
    scf.for %arg6 = %c0_i32 to %0 step %c1_i32  : i32 {
      %c1_i32_8 = arith.constant 1 : i32
      %12 = arith.muli %arg6, %c1_i32_8 : i32
      %c0_i32_9 = arith.constant 0 : i32
      %13 = arith.addi %c0_i32_9, %12 : i32
      %c128_i32_10 = arith.constant 128 : i32
      %14 = arith.muli %arg0, %c128_i32_10 : i32
      %15 = arith.addi %14, %13 : i32
      %16 = arith.index_cast %15 : i32 to index
      %17 = memref.load %arg1[%16] : memref<256xi32, #tpu.memory_space<smem>>
      %18 = arith.index_cast %17 : i32 to index
      %c0_11 = arith.constant 0 : index
      %19 = vector.load %arg3[%18, %c0_11] : memref<37x128xf32, #tpu.memory_space<vmem>>, vector<1x128xf32>
      %20 = arith.index_cast %13 : i32 to index
      %c0_12 = arith.constant 0 : index
      %21 = vector.load %arg5[%20, %c0_12] : memref<128x128xf32, #tpu.memory_space<vmem>>, vector<1x128xf32>
      tpu.vector_store %arg5[%20, %c0_12], %19 {strides = array<i32>} : memref<128x128xf32, #tpu.memory_space<vmem>>, vector<1x128xf32>,
    }
    %c128_i32_0 = arith.constant 128 : i32
    %c0 = arith.constant 0 : index
    %c0_1 = arith.constant 0 : index
    %1 = vector.load %arg2[%c0, %c0_1] : memref<128x128xf32, #tpu.memory_space<vmem>>, vector<128x128xf32>
    %c0_2 = arith.constant 0 : index
    %c0_3 = arith.constant 0 : index
    %2 = vector.load %arg5[%c0_2, %c0_3] : memref<128x128xf32, #tpu.memory_space<vmem>>, vector<128x128xf32>
    %3 = arith.subf %1, %2 : vector<128x128xf32>
    %4 = arith.mulf %3, %3 : vector<128x128xf32>
    %cst = arith.constant dense<0.000000e+00> : vector<128xf32>
    %5 = vector.multi_reduction <add>, %4, %cst [1] : vector<128x128xf32> to vector<128xf32>
    %6 = vector.shape_cast %5 : vector<128xf32> to vector<128x1xf32>
    %cst_4 = arith.constant 9.99999996E-13 : f32
    %cst_5 = arith.constant 9.99999995E+11 : f32
    %7 = vector.broadcast %cst_4 : f32 to vector<128x1xf32>
    %8 = arith.maximumf %7, %6 : vector<128x1xf32>
    %9 = vector.broadcast %cst_5 : f32 to vector<128x1xf32>
    %10 = arith.minimumf %9, %8 : vector<128x1xf32>
    %c0_6 = arith.constant 0 : index
    %c0_7 = arith.constant 0 : index
    %11 = vector.load %arg4[%c0_6, %c0_7] : memref<128x1xf32, #tpu.memory_space<vmem>>, vector<128x1xf32>
    tpu.vector_store %arg4[%c0_6, %c0_7], %10 {strides = array<i32>} : memref<128x1xf32, #tpu.memory_space<vmem>>, vector<128x1xf32>,
    return
  }
  func.func @transform_0(%arg0: i32, %arg1: memref<256xi32, #tpu.memory_space<smem>>) -> (i32, i32) {
    %c0_i32 = arith.constant 0 : i32
    %c0_i32_0 = arith.constant 0 : i32
    return %arg0, %c0_i32 : i32, i32
  }
  func.func @transform_1(%arg0: i32, %arg1: memref<256xi32, #tpu.memory_space<smem>>) -> (i32, i32) {
    %c0_i32 = arith.constant 0 : i32
    %c0_i32_0 = arith.constant 0 : i32
    %c0_i32_1 = arith.constant 0 : i32
    return %c0_i32, %c0_i32_0 : i32, i32
  }
  func.func @transform_2(%arg0: i32, %arg1: memref<256xi32, #tpu.memory_space<smem>>) -> (i32, i32) {
    %c0_i32 = arith.constant 0 : i32
    %c0_i32_0 = arith.constant 0 : i32
    return %arg0, %c0_i32 : i32, i32
  }
}

</mosaic_0001>

<llo_original>
// kernel: tpu_custom_call.1
$region0: #{tpu_custom_call.1}
  #allocation0 [shape = 'u32[]', space=smem, size = 0x4, offset = 0x4, fixed_abs, tag = 'smem constant byte address 0x4 - core index']
  #allocation1 [shape = 'u32[72,128]{1,0:T(1,128)}', space=vmem, size = 0x9000, scoped, tag = 'internal scratch']
  #allocation2 [shape = 'f32[128,128]{1,0:T(8,128)}', space=vmem, size = 0x10000, scoped, tag = 'scratch operand']
  #allocation3 [shape = 's32[1]{0}', space=sflag, size = 0x4, scoped, tag = 'scoped memory for tpu_custom_call.1']
  #allocation4 [shape = 'u8[1024]{0}', space=smem, size = 0x400, scoped, tag = 'prefetched SMEM operand 0']
  %s0 = inlined_call_operand.hbm [shape: s32[256], index: 0, kind: input, shape index: {}]
  %s1 = inlined_call_operand.hbm [shape: f32[256,128], index: 1, kind: input, shape index: {}]
  %s2 = inlined_call_operand.hbm [shape: f32[37,128], index: 2, kind: input, shape index: {}]
  %s3 = inlined_call_operand.vmem [shape: f32[256,1], index: 3, kind: output, shape index: {}]
  %s4 = sld [smem:[#allocation0]]
  $region56: #{tpu_custom_call.1} parent=0
    _
  %s6 = ssub.s32 1, %s4
  %s7 = scalar_select 0, %s6, %s4
  %s9 = sshll.u32 %s0, 4
  %s10 = int_to_ptr.hbm [resolvable:$true] %s9
  %12 = dma.hbm_to_smem %s10, 32, [#allocation4], [#allocation3]
  %14 = dma.done [#allocation3], 32
  %15 = sfence
  $region1: #{tpu_custom_call.1} parent=0
    #allocation5 [shape = 'u8[131072]{0}', space=vmem, size = 0x20000, scoped, tag = 'input window, operand 1']
    #allocation6 [shape = 's32[2]{0}', space=sflag, size = 0x8, scoped, tag = 'scoped memory for tpu_custom_call.1']
    #allocation7 [shape = 'u8[20480]{0}', space=vmem, size = 0x5000, scoped, tag = 'input window, operand 2, single buffered']
    #allocation8 [shape = 's32[1]{0}', space=sflag, size = 0x4, scoped, tag = 'scoped memory for tpu_custom_call.1']
    %16 = vsyncpa [#allocation6], 0
    %s17 = scalar_lea.sflag [#allocation6], 1
    %18 = vsyncpa %s17, 0
    %19 = vsyncpa [#allocation8], 0
    loop: start=0, step=1, limit=4
    $region2: #{tpu_custom_call.1} parent=1 // loop_pre_header
      _
    $region3: #{tpu_custom_call.1} parent=1 // loop_header
      %s21 = sphi 0, %s25
      %p22 = scmp.ge.s32.totalorder %s21, 4
      %s31 = sphi 0, %s33
      %s34 = sphi 0, %s31
      %s35 = sphi 0, %s34
      %s51 = sphi 0, %s35
      %s55 = sphi 0, %s55
      %s57 = sphi 0, %s55
      %s58 = sphi 0, %s57
      %s72 = sphi 0, %s58
      %s78 = sphi 0, %s80
      %s81 = sphi 0, %s78
      %s82 = sphi 0, %s81
      %s98 = sphi 0, %s82
    $region4: #{tpu_custom_call.1} parent=1 // loop_header_branch
      %24 = sbr.rel (%p22) target = $region8
    $region5: #{tpu_custom_call.1} parent=1 // loop_body
      %s26 = ssub.s32 %s21, 1
      %s27 = ssub.s32 %s21, 2
      %s28 = sadd.s32 %s21, 1
      %s29 = ssub.s32 %s21, %s28
      %p30 = scmp.eq.s32.totalorder %s29, 0
      %s32 = sadd.s32 %s31, 1
      %s33 = scalar_select %p30, %s31, %s32
      %p36 = pneg %p30
      %p37 = scmp.eq.s32.totalorder %s21, 1
      %p38 = por %p36, %p37
      %p39 = scmp.ne.s32.totalorder %s31, %s34
      %p40 = scmp.eq.s32.totalorder %s21, 0
      %p41 = por %p39, %p40
      %p42 = scmp.ne.s32.totalorder %s31, %s34
      %p43 = scmp.eq.s32.totalorder %s26, 1
      %p44 = por %p42, %p43
      %p45 = scmp.ne.s32.totalorder %s34, %s35
      %p46 = scmp.eq.s32.totalorder %s26, 0
      %p47 = por %p45, %p46
      %p48 = scmp.ne.s32.totalorder %s34, %s35
      %p49 = scmp.eq.s32.totalorder %s27, 1
      %p50 = por %p48, %p49
      %p52 = scmp.ne.s32.totalorder %s35, %s51
      %p53 = scmp.eq.s32.totalorder %s27, 0
      %p54 = por %p52, %p53
      %s56 = sadd.s32 %s55, 1
      %p59 = scmp.eq.s32.totalorder %s21, 1
      %p60 = scmp.ne.s32.totalorder %s55, %s57
      %p61 = scmp.eq.s32.totalorder %s21, 0
      %p62 = por %p60, %p61
      %p63 = scmp.ne.s32.totalorder %s55, %s57
      %p64 = scmp.eq.s32.totalorder %s26, 1
      %p65 = por %p63, %p64
      %p66 = scmp.ne.s32.totalorder %s57, %s58
      %p67 = scmp.eq.s32.totalorder %s26, 0
      %p68 = por %p66, %p67
      %p69 = scmp.ne.s32.totalorder %s57, %s58
      %p70 = scmp.eq.s32.totalorder %s27, 1
      %p71 = por %p69, %p70
      %p73 = scmp.ne.s32.totalorder %s58, %s72
      %p74 = scmp.eq.s32.totalorder %s27, 0
      %p75 = por %p73, %p74
      %s76 = ssub.s32 %s21, %s28
      %p77 = scmp.eq.s32.totalorder %s76, 0
      %s79 = sadd.s32 %s78, 1
      %s80 = scalar_select %p77, %s78, %s79
      %p83 = pneg %p77
      %p84 = scmp.eq.s32.totalorder %s21, 1
      %p85 = por %p83, %p84
      %p86 = scmp.ne.s32.totalorder %s78, %s81
      %p87 = scmp.eq.s32.totalorder %s21, 0
      %p88 = por %p86, %p87
      %p89 = scmp.ne.s32.totalorder %s78, %s81
      %p90 = scmp.eq.s32.totalorder %s26, 1
      %p91 = por %p89, %p90
      %p92 = scmp.ne.s32.totalorder %s81, %s82
      %p93 = scmp.eq.s32.totalorder %s26, 0
      %p94 = por %p92, %p93
      %p95 = scmp.ne.s32.totalorder %s81, %s82
      %p96 = scmp.eq.s32.totalorder %s27, 1
      %p97 = por %p95, %p96
      %p99 = scmp.ne.s32.totalorder %s82, %s98
      %p100 = scmp.eq.s32.totalorder %s27, 0
      %p101 = por %p99, %p100
      %p102 = scmp.le.s32.totalorder 1, %s21
      %p103 = scmp.lt.s32.totalorder %s21, 3
      %p104 = pnand %p102, %p103
      %p105 = pneg %p104
      // Predicated region
      $region9: #{tpu_custom_call.1} parent=5 // pred_check
        _
      $region10: #{tpu_custom_call.1} parent=5 // pred_check_branch
        %107 = sbr.rel (%p104) target = $region12
      $region11: #{tpu_custom_call.1} parent=5 // pred_region
        %s108 = ssub.s32 %s21, 1
        // Predicated region
        $region13: #{tpu_custom_call.1} parent=11 // pred_check
          %p109 = pneg %p68
        $region14: #{tpu_custom_call.1} parent=11 // pred_check_branch
          %111 = sbr.rel (%p109) target = $region16
        $region15: #{tpu_custom_call.1} parent=11 // pred_region
          %113 = vsyncadd [#allocation8], 0
          %s114 = sshll.u32 %s2, 4
          %s115 = int_to_ptr.hbm [resolvable:$true] %s114
          %s116 = sshll.u32 [#allocation7], 4
          %s117 = int_to_ptr.vmem [resolvable:$true] %s116
          %122 = dma.hbm_to_vmem [thread:$0]  %s115, 640, %s117, [#allocation8], 128, 128, 8
        $region16: #{tpu_custom_call.1} parent=11 // pred_fallthru
          _
      $region12: #{tpu_custom_call.1} parent=5 // pred_fallthru
        _
      %p123 = scmp.lt.s32.totalorder %s21, 2
      // Predicated region
      $region17: #{tpu_custom_call.1} parent=5 // pred_check
        %p124 = pneg %p123
      $region18: #{tpu_custom_call.1} parent=5 // pred_check_branch
        %126 = sbr.rel (%p124) target = $region20
      $region19: #{tpu_custom_call.1} parent=5 // pred_region
        // Predicated region
        $region21: #{tpu_custom_call.1} parent=19 // pred_check
          %p127 = pneg %p41
        $region22: #{tpu_custom_call.1} parent=19 // pred_check_branch
          %129 = sbr.rel (%p127) target = $region24
        $region23: #{tpu_custom_call.1} parent=19 // pred_region
          %s130 = sand.u32 %s31, 1
          %s131 = scalar_lea.sflag [#allocation6], %s130
          %s132 = sand.u32 %s31, 1
          %s133 = smul.addr %s132, 128
          %s134 = scalar_lea.vmem [#allocation5], %s133
          %s135 = smul.u32 16, %s21
          %137 = vsyncadd %s131, 0
          %s138 = smul.addr %s135, 8
          %s139 = scalar_lea.hbm %s1, %s138
          %s140 = sshll.u32 %s139, 4
          %s141 = int_to_ptr.hbm [resolvable:$true] %s140
          %s142 = sshll.u32 %s134, 4
          %s143 = int_to_ptr.vmem [resolvable:$true] %s142
          %148 = dma.hbm_to_vmem [thread:$0]  %s141, 2048, %s143, %s131, 128, 128, 8
        $region24: #{tpu_custom_call.1} parent=19 // pred_fallthru
          _
      $region20: #{tpu_custom_call.1} parent=5 // pred_fallthru
        _
      %p149 = scmp.le.s32.totalorder 1, %s21
      %p150 = scmp.lt.s32.totalorder %s21, 3
      %p151 = pnand %p149, %p150
      %p152 = pneg %p151
      // Predicated region
      $region25: #{tpu_custom_call.1} parent=5 // pred_check
        _
      $region26: #{tpu_custom_call.1} parent=5 // pred_check_branch
        %154 = sbr.rel (%p151) target = $region28
      $region27: #{tpu_custom_call.1} parent=5 // pred_region
        %s155 = ssub.s32 %s21, 1
        %s156 = sand.u32 %s34, 1
        %s157 = scalar_lea.sflag [#allocation6], %s156
        %s158 = sand.u32 %s34, 1
        %s159 = smul.addr %s158, 128
        %s160 = scalar_lea.vmem [#allocation5], %s159
        // Predicated region
        $region29: #{tpu_custom_call.1} parent=27 // pred_check
          %p161 = pneg %p47
        $region30: #{tpu_custom_call.1} parent=27 // pred_check_branch
          %163 = sbr.rel (%p161) target = $region32
        $region31: #{tpu_custom_call.1} parent=27 // pred_region
          %165 = dma.done %s157, 2048
        $region32: #{tpu_custom_call.1} parent=27 // pred_fallthru
          _
        // Predicated region
        $region33: #{tpu_custom_call.1} parent=27 // pred_check
          %p166 = pneg %p68
        $region34: #{tpu_custom_call.1} parent=27 // pred_check_branch
          %168 = sbr.rel (%p166) target = $region36
        $region35: #{tpu_custom_call.1} parent=27 // pred_region
          %170 = dma.done [#allocation8], 640
        $region36: #{tpu_custom_call.1} parent=27 // pred_fallthru
          _
        %s171 = sand.u32 %s34, 1
        %s172 = scalar_lea.sflag [#allocation6], %s171
        %s173 = sand.u32 %s34, 1
        %s174 = smul.addr %s173, 128
        %s175 = scalar_lea.vmem [#allocation5], %s174
        %p176 = pneg %p47
        %p177 = pneg %p44
        %p178 = pneg %p68
        %p179 = pneg %p65
        %p180 = pneg %p94
        %p181 = pneg %p91
        %s182 = smul.u32 16, %s26
        %p183 = scmp.lt.s32.totalorder %s182, 31
        %s184 = scalar_select %p183, %s182, 31
        %s185 = smul.addr %s184, 8
        %s186 = scalar_lea.vmem %s3, %s185
        %s187 = smul.u32 16, %s26
        %s188 = smul.u32 16, %s26
        %p189 = scmp.lt.s32.totalorder %s188, 31
        %s190 = scalar_select %p189, %s188, 31
        %s191 = smul.addr %s190, 8
        %s192 = scalar_lea.vmem %s3, %s191
        %s193 = smul.u32 16, %s26
        loop: start=0, step=1, limit=128
        $region37: #{tpu_custom_call.1} parent=27 // loop_pre_header
          _
        $region38: #{tpu_custom_call.1} parent=27 // loop_header
          %s195 = sphi 0, %s199
          %p196 = scmp.ge.s32.totalorder %s195, 128
        $region39: #{tpu_custom_call.1} parent=27 // loop_header_branch
          %198 = sbr.rel (%p196) target = $region43
        $region40: #{tpu_custom_call.1} parent=27 // loop_body
          %s200 = smul.u32 %s26, 128
          %s201 = sadd.s32 %s200, %s195
          %s202 = sld [smem:[#allocation4 + %s201]]
          %s203 = scalar_lea.vmem [#allocation7], %s202
          %v204 = vld [vmem:[%s203] sm:$0x1]
          %s205 = scalar_lea.vmem [#allocation2], %s195
          %206 = vst [vmem:[%s205] sm:$0x1] %v204
        $region41: #{tpu_custom_call.1} parent=27 // loop_footer
          %s199 = sadd.s32 1, %s195
        $region42: #{tpu_custom_call.1} parent=27 // loop_footer_branch
          %194 = sbr.rel target = $region38
        $region43: #{tpu_custom_call.1} parent=27 // loop_exit
          _
        %v207 = vld [vmem:[%s160] sm:$0xff]
        %v208 = vld [vmem:[%s160 + $0x8] sm:$0xff]
        %v209 = vld [vmem:[%s160 + $0x10] sm:$0xff]
        %v210 = vld [vmem:[%s160 + $0x18] sm:$0xff]
        %v211 = vld [vmem:[%s160 + $0x20] sm:$0xff]
        %v212 = vld [vmem:[%s160 + $0x28] sm:$0xff]
        %v213 = vld [vmem:[%s160 + $0x30] sm:$0xff]
        %v214 = vld [vmem:[%s160 + $0x38] sm:$0xff]
        %v215 = vld [vmem:[%s160 + $0x40] sm:$0xff]
        %v216 = vld [vmem:[%s160 + $0x48] sm:$0xff]
        %v217 = vld [vmem:[%s160 + $0x50] sm:$0xff]
        %v218 = vld [vmem:[%s160 + $0x58] sm:$0xff]
        %v219 = vld [vmem:[%s160 + $0x60] sm:$0xff]
        %v220 = vld [vmem:[%s160 + $0x68] sm:$0xff]
        %v221 = vld [vmem:[%s160 + $0x70] sm:$0xff]
        %v222 = vld [vmem:[%s160 + $0x78] sm:$0xff]
        %v223 = vld [vmem:[#allocation2] sm:$0xff]
        %v224 = vld [vmem:[#allocation2 + $0x8] sm:$0xff]
        %v225 = vld [vmem:[#allocation2 + $0x10] sm:$0xff]
        %v226 = vld [vmem:[#allocation2 + $0x18] sm:$0xff]
        %v227 = vld [vmem:[#allocation2 + $0x20] sm:$0xff]
        %v228 = vld [vmem:[#allocation2 + $0x28] sm:$0xff]
        %v229 = vld [vmem:[#allocation2 + $0x30] sm:$0xff]
        %v230 = vld [vmem:[#allocation2 + $0x38] sm:$0xff]
        %v231 = vld [vmem:[#allocation2 + $0x40] sm:$0xff]
        %v232 = vld [vmem:[#allocation2 + $0x48] sm:$0xff]
        %v233 = vld [vmem:[#allocation2 + $0x50] sm:$0xff]
        %v234 = vld [vmem:[#allocation2 + $0x58] sm:$0xff]
        %v235 = vld [vmem:[#allocation2 + $0x60] sm:$0xff]
        %v236 = vld [vmem:[#allocation2 + $0x68] sm:$0xff]
        %v237 = vld [vmem:[#allocation2 + $0x70] sm:$0xff]
        %v238 = vld [vmem:[#allocation2 + $0x78] sm:$0xff]
        %v239 = vsub.f32 %v207, %v223
        %v240 = vsub.f32 %v208, %v224
        %v241 = vsub.f32 %v209, %v225
        %v242 = vsub.f32 %v210, %v226
        %v243 = vsub.f32 %v211, %v227
        %v244 = vsub.f32 %v212, %v228
        %v245 = vsub.f32 %v213, %v229
        %v246 = vsub.f32 %v214, %v230
        %v247 = vsub.f32 %v215, %v231
        %v248 = vsub.f32 %v216, %v232
        %v249 = vsub.f32 %v217, %v233
        %v250 = vsub.f32 %v218, %v234
        %v251 = vsub.f32 %v219, %v235
        %v252 = vsub.f32 %v220, %v236
        %v253 = vsub.f32 %v221, %v237
        %v254 = vsub.f32 %v222, %v238
        %v255 = vmul.f32 %v239, %v239
        %v256 = vmul.f32 %v240, %v240
        %v257 = vmul.f32 %v241, %v241
        %v258 = vmul.f32 %v242, %v242
        %v259 = vmul.f32 %v243, %v243
        %v260 = vmul.f32 %v244, %v244
        %v261 = vmul.f32 %v245, %v245
        %v262 = vmul.f32 %v246, %v246
        %v263 = vmul.f32 %v247, %v247
        %v264 = vmul.f32 %v248, %v248
        %v265 = vmul.f32 %v249, %v249
        %v266 = vmul.f32 %v250, %v250
        %v267 = vmul.f32 %v251, %v251
        %v268 = vmul.f32 %v252, %v252
        %v269 = vmul.f32 %v253, %v253
        %v270 = vmul.f32 %v254, %v254
        %271 = vadd.xlane.f32.xlu0 %v255
        %v272 = vpop.xlane.xlu0 %271
        %273 = vadd.xlane.f32.xlu0 %v256
        %v274 = vpop.xlane.xlu0 %273
        %275 = vadd.xlane.f32.xlu0 %v257
        %v276 = vpop.xlane.xlu0 %275
        %277 = vadd.xlane.f32.xlu0 %v258
        %v278 = vpop.xlane.xlu0 %277
        %279 = vadd.xlane.f32.xlu0 %v259
        %v280 = vpop.xlane.xlu0 %279
        %281 = vadd.xlane.f32.xlu0 %v260
        %v282 = vpop.xlane.xlu0 %281
        %283 = vadd.xlane.f32.xlu0 %v261
        %v284 = vpop.xlane.xlu0 %283
        %285 = vadd.xlane.f32.xlu0 %v262
        %v286 = vpop.xlane.xlu0 %285
        %287 = vadd.xlane.f32.xlu0 %v263
        %v288 = vpop.xlane.xlu0 %287
        %289 = vadd.xlane.f32.xlu0 %v264
        %v290 = vpop.xlane.xlu0 %289
        %291 = vadd.xlane.f32.xlu0 %v265
        %v292 = vpop.xlane.xlu0 %291
        %293 = vadd.xlane.f32.xlu0 %v266
        %v294 = vpop.xlane.xlu0 %293
        %295 = vadd.xlane.f32.xlu0 %v267
        %v296 = vpop.xlane.xlu0 %295
        %297 = vadd.xlane.f32.xlu0 %v268
        %v298 = vpop.xlane.xlu0 %297
        %299 = vadd.xlane.f32.xlu0 %v269
        %v300 = vpop.xlane.xlu0 %299
        %301 = vadd.xlane.f32.xlu0 %v270
        %v302 = vpop.xlane.xlu0 %301
        %v303 = vmax.f32 %v272, 1e-12
        %v304 = vmax.f32 %v274, 1e-12
        %v305 = vmax.f32 %v276, 1e-12
        %v306 = vmax.f32 %v278, 1e-12
        %v307 = vmax.f32 %v280, 1e-12
        %v308 = vmax.f32 %v282, 1e-12
        %v309 = vmax.f32 %v284, 1e-12
        %v310 = vmax.f32 %v286, 1e-12
        %v311 = vmax.f32 %v288, 1e-12
        %v312 = vmax.f32 %v290, 1e-12
        %v313 = vmax.f32 %v292, 1e-12
        %v314 = vmax.f32 %v294, 1e-12
        %v315 = vmax.f32 %v296, 1e-12
        %v316 = vmax.f32 %v298, 1e-12
        %v317 = vmax.f32 %v300, 1e-12
        %v318 = vmax.f32 %v302, 1e-12
        %v319 = vmin.f32 %v303, 1e+12
        %v320 = vmin.f32 %v304, 1e+12
        %v321 = vmin.f32 %v305, 1e+12
        %v322 = vmin.f32 %v306, 1e+12
        %v323 = vmin.f32 %v307, 1e+12
        %v324 = vmin.f32 %v308, 1e+12
        %v325 = vmin.f32 %v309, 1e+12
        %v326 = vmin.f32 %v310, 1e+12
        %v327 = vmin.f32 %v311, 1e+12
        %v328 = vmin.f32 %v312, 1e+12
        %v329 = vmin.f32 %v313, 1e+12
        %v330 = vmin.f32 %v314, 1e+12
        %v331 = vmin.f32 %v315, 1e+12
        %v332 = vmin.f32 %v316, 1e+12
        %v333 = vmin.f32 %v317, 1e+12
        %v334 = vmin.f32 %v318, 1e+12
        %vm335 = vcmask 7168
        %336 = vst.msk [vmem:[%s192] sm:$0xff] %vm335, %v319
        %337 = vst.msk [vmem:[%s192 + $0x8] sm:$0xff] %vm335, %v320
        %338 = vst.msk [vmem:[%s192 + $0x10] sm:$0xff] %vm335, %v321
        %339 = vst.msk [vmem:[%s192 + $0x18] sm:$0xff] %vm335, %v322
        %340 = vst.msk [vmem:[%s192 + $0x20] sm:$0xff] %vm335, %v323
        %341 = vst.msk [vmem:[%s192 + $0x28] sm:$0xff] %vm335, %v324
        %342 = vst.msk [vmem:[%s192 + $0x30] sm:$0xff] %vm335, %v325
        %343 = vst.msk [vmem:[%s192 + $0x38] sm:$0xff] %vm335, %v326
        %344 = vst.msk [vmem:[%s192 + $0x40] sm:$0xff] %vm335, %v327
        %345 = vst.msk [vmem:[%s192 + $0x48] sm:$0xff] %vm335, %v328
        %346 = vst.msk [vmem:[%s192 + $0x50] sm:$0xff] %vm335, %v329
        %347 = vst.msk [vmem:[%s192 + $0x58] sm:$0xff] %vm335, %v330
        %348 = vst.msk [vmem:[%s192 + $0x60] sm:$0xff] %vm335, %v331
        %349 = vst.msk [vmem:[%s192 + $0x68] sm:$0xff] %vm335, %v332
        %350 = vst.msk [vmem:[%s192 + $0x70] sm:$0xff] %vm335, %v333
        %351 = vst.msk [vmem:[%s192 + $0x78] sm:$0xff] %vm335, %v334
        %s352 = smul.u32 16, %s26
        %p353 = scmp.lt.s32.totalorder %s352, 31
        %s354 = scalar_select %p353, %s352, 31
        %s355 = smul.addr %s354, 8
        %s356 = scalar_lea.vmem %s3, %s355
        // Predicated region
        $region44: #{tpu_custom_call.1} parent=27 // pred_check
          %p357 = pneg %p91
        $region45: #{tpu_custom_call.1} parent=27 // pred_check_branch
          %359 = sbr.rel (%p357) target = $region47
        $region46: #{tpu_custom_call.1} parent=27 // pred_region
          %s360 = smul.u32 16, %s26
        $region47: #{tpu_custom_call.1} parent=27 // pred_fallthru
          _
      $region28: #{tpu_custom_call.1} parent=5 // pred_fallthru
        _
      %p361 = scmp.le.s32.totalorder 2, %s21
      // Predicated region
      $region48: #{tpu_custom_call.1} parent=5 // pred_check
        %p362 = pneg %p361
      $region49: #{tpu_custom_call.1} parent=5 // pred_check_branch
        %364 = sbr.rel (%p362) target = $region51
      $region50: #{tpu_custom_call.1} parent=5 // pred_region
        %s365 = ssub.s32 %s21, 2
        // Predicated region
        $region52: #{tpu_custom_call.1} parent=50 // pred_check
          %p366 = pneg %p97
        $region53: #{tpu_custom_call.1} parent=50 // pred_check_branch
          %368 = sbr.rel (%p366) target = $region55
        $region54: #{tpu_custom_call.1} parent=50 // pred_region
          %s369 = smul.u32 16, %s27
          %p370 = scmp.lt.s32.totalorder %s369, 31
          %s371 = scalar_select %p370, %s369, 31
          %s372 = smul.addr %s371, 8
          %s373 = scalar_lea.vmem %s3, %s372
        $region55: #{tpu_custom_call.1} parent=50 // pred_fallthru
          _
      $region51: #{tpu_custom_call.1} parent=5 // pred_fallthru
        _
    $region6: #{tpu_custom_call.1} parent=1 // loop_footer
      %s25 = sadd.s32 1, %s21
    $region7: #{tpu_custom_call.1} parent=1 // loop_footer_branch
      %20 = sbr.rel target = $region3
    $region8: #{tpu_custom_call.1} parent=1 // loop_exit
      _
    %374 = vsyncpa [#allocation6], 1
    %s375 = scalar_lea.sflag [#allocation6], 1
    %376 = vsyncpa %s375, 1
    %377 = vsyncpa [#allocation8], 1

</llo_original>
